<compile_context>
chip_gen: v6e
topology: v6e:2x2x1
jax: 0.10.0
libtpu: 0.0.40
codegen_flags: <defaults>
</compile_context>

<pallas_src>
import jax
import jax.numpy as jnp
from jax.experimental import pallas as pl
from jax.experimental.pallas import tpu as pltpu

_LN_EPS = 1e-5


def _round_up(x, m):
    return ((x + m - 1) // m) * m


def _dual_layer_norm(h, gamma, beta, half):
    """Per-half LayerNorm of a [T, 2*half] tile (two fused trunks), mask based.

    Only two lane reductions per statistic (total + left half); the right half
    is recovered as total - left; rsqrt is applied to [T, 1] columns only."""
    lane = jax.lax.broadcasted_iota(jnp.int32, h.shape, 1)
    left = lane < half
    inv = 1.0 / float(half)
    h_l = jnp.where(left, h, 0.0)
    s_tot = jnp.sum(h, axis=-1, keepdims=True)
    s_l = jnp.sum(h_l, axis=-1, keepdims=True)
    mu = jnp.where(left, s_l, s_tot - s_l) * inv
    d = h - mu
    d_l = jnp.where(left, d, 0.0)
    v_tot = jnp.sum(d * d, axis=-1, keepdims=True)
    v_l = jnp.sum(d_l * d_l, axis=-1, keepdims=True)
    inv_std_l = jax.lax.rsqrt(v_l * inv + _LN_EPS)
    inv_std_r = jax.lax.rsqrt((v_tot - v_l) * inv + _LN_EPS)
    return d * jnp.where(left, inv_std_l, inv_std_r) * gamma + beta


def _make_kernel(pre_hidden_layers, actor_hidden_layers, hidden,
                 featw, actw, outw):
    """Fused ActorModel forward (deterministic mean-action path)."""
    prew = 2 * hidden

    def kernel(x_ref, *refs):
        out_ref = refs[-1]
        bias_ref = refs[-2]
        w_refs = refs[:-2]
        wi = iter(w_refs)
        row = [0]

        def bias(width):                       # static row read from bias slab
            r = row[0]
            row[0] += 1
            return bias_ref[r:r + 1, :width]   # (1, width), f32

        def mm(x, w_ref):
            # Matmul operands may be bf16 (MXU throughput); accumulate in f32.
            return jnp.dot(x.astype(w_ref.dtype), w_ref[...],
                           preferred_element_type=jnp.float32)

        x = x_ref[...]                         # [T, obs+z]

        # Fused first layers of both preprocessor trunks -> [T, 2H]
        h = mm(x, next(wi)) + bias(prew)
        gamma = bias(prew)
        beta = bias(prew)
        h = jnp.tanh(_dual_layer_norm(h, gamma, beta, hidden))

        # Fused (block-diagonal) preprocessor hidden layers: [T,2H] @ [2H,2H]
        for _ in range(pre_hidden_layers - 1):
            h = jnp.maximum(mm(h, next(wi)) + bias(prew), 0.0)

        # Fused preprocessor output layer -> feat == cat([f1, f2]) (lane padded)
        feat = mm(h, next(wi)) + bias(featw)

        # Actor trunk on cat([f1, f2])
        a = jnp.maximum(mm(feat, next(wi)) + bias(actw), 0.0)
        for _ in range(actor_hidden_layers - 1):
            a = jnp.maximum(mm(a, next(wi)) + bias(actw), 0.0)

        # clip(tanh(mu), -1, 1) == tanh(mu); padded lanes hold tanh(0)=0 and are
        # sliced off host-side -> full-width unmasked store (lane-dense out).
        out_ref[...] = jnp.tanh(mm(a, next(wi)) + bias(outw))

    return kernel


# ----------------------------- parameter init --------------------------------

def _init_linear(key, fan_in, fan_out):
    # PyTorch nn.Linear default init: U(-1/sqrt(fan_in), 1/sqrt(fan_in))
    kw, kb = jax.random.split(key)
    bound = 1.0 / float(fan_in) ** 0.5
    w = jax.random.uniform(kw, (fan_in, fan_out), jnp.float32, -bound, bound)
    b = jax.random.uniform(kb, (1, fan_out), jnp.float32, -bound, bound)
    return w, b


def make_preproc_params(key, in_dims, hidden, out, hidden_layers):
    keys = jax.random.split(key, hidden_layers + 1)
    params = []
    w0, b0 = _init_linear(keys[0], sum(in_dims), hidden)
    off = 0
    for d in in_dims:                     # split first-layer weight by input parts
        params.append(w0[off:off + d]); off += d
    params.append(b0)
    params.append(jnp.ones((1, hidden), jnp.float32))    # LayerNorm gamma
    params.append(jnp.zeros((1, hidden), jnp.float32))   # LayerNorm beta
    for li in range(1, hidden_layers):
        wi, bi = _init_linear(keys[li], hidden, hidden)
        params += [wi, bi]
    wo, bo = _init_linear(keys[-1], hidden, out)
    params += [wo, bo]
    return params


def make_actor_params(key, in_dims, hidden, out, hidden_layers):
    keys = jax.random.split(key, hidden_layers + 1)
    params = []
    w0, b0 = _init_linear(keys[0], sum(in_dims), hidden)
    off = 0
    for d in in_dims:
        params.append(w0[off:off + d]); off += d
    params.append(b0)
    for li in range(1, hidden_layers):
        wi, bi = _init_linear(keys[li], hidden, hidden)
        params += [wi, bi]
    wo, bo = _init_linear(keys[-1], hidden, out)
    params += [wo, bo]
    return params


# --------------------------- host-side param fusion ---------------------------

def _block_diag(a, b):
    za = jnp.zeros((a.shape[0], b.shape[1]), jnp.float32)
    zb = jnp.zeros((b.shape[0], a.shape[1]), jnp.float32)
    return jnp.concatenate(
        [jnp.concatenate([a, za], axis=1), jnp.concatenate([zb, b], axis=1)], axis=0)


def _pad2(w, rows, cols):
    return jnp.pad(w, ((0, rows - w.shape[0]), (0, cols - w.shape[1])))


def _fuse_params(p_pre1, p_pre2, p_act, z_dim, pre_hidden_layers,
                 actor_hidden_layers, weight_dtype):
    """Exactly-equivalent fusion of the two preprocessor trunks + actor.

    - two trunks -> one 128-lane trunk (concatenated first layers, block-diag
      hidden/output layers); torch.cat disappears entirely,
    - every layer output width zero-padded to a multiple of 128 (lane-dense),
    - all bias / gamma / beta rows packed into one (rows, BIASW) slab,
    - weights optionally cast to bf16 (MXU operands); bias slab stays f32.
    """
    H = p_pre1[0].shape[1]
    F = p_pre1[-2].shape[1]
    AH = p_act[0].shape[1]
    A = p_act[-2].shape[1]
    PREW = 2 * H
    FEATW = max(128, _round_up(2 * F, 128))
    ACTW = max(128, _round_up(AH, 128))
    OUTW = max(128, _round_up(A, 128))
    BIASW = max(PREW, FEATW, ACTW, OUTW)

    weights, bias_rows = [], []

    def add_bias(vec):
        v = vec.reshape(1, -1).astype(jnp.float32)
        bias_rows.append(jnp.pad(v, ((0, 0), (0, BIASW - v.shape[1]))))

    # First layers: outputs concatenated ([obs,z] -> 2H); z only feeds trunk 2.
    top = jnp.concatenate([p_pre1[0], p_pre2[0]], axis=1)             # [obs, 2H]
    bot = jnp.concatenate([jnp.zeros((z_dim, H), jnp.float32), p_pre2[1]], axis=1)
    weights.append(jnp.concatenate([top, bot], axis=0))               # [obs+z, 2H]
    add_bias(jnp.concatenate([p_pre1[1], p_pre2[2]], axis=1))         # bias
    add_bias(jnp.concatenate([p_pre1[2], p_pre2[3]], axis=1))         # LN gamma
    add_bias(jnp.concatenate([p_pre1[3], p_pre2[4]], axis=1))         # LN beta

    i1, i2 = 4, 5
    for _ in range(pre_hidden_layers - 1):                            # [2H, 2H]
        weights.append(_block_diag(p_pre1[i1], p_pre2[i2]))
        add_bias(jnp.concatenate([p_pre1[i1 + 1], p_pre2[i2 + 1]], axis=1))
        i1 += 2; i2 += 2

    # Preprocessor output layer -> feat == cat([f1, f2]); lane-padded to FEATW.
    weights.append(_pad2(_block_diag(p_pre1[i1], p_pre2[i2]), PREW, FEATW))
    add_bias(jnp.concatenate([p_pre1[i1 + 1], p_pre2[i2 + 1]], axis=1))

    # Actor first layer over cat([f1, f2]) (undo input-part row split), padded.
    w_a0 = jnp.concatenate([p_act[0], p_act[1]], axis=0)              # [2F, AH]
    weights.append(_pad2(w_a0, FEATW, ACTW))
    add_bias(p_act[2])
    idx = 3
    for _ in range(actor_hidden_layers - 1):
        weights.append(_pad2(p_act[idx], ACTW, ACTW))
        add_bias(p_act[idx + 1])
        idx += 2
    weights.append(_pad2(p_act[idx], ACTW, OUTW))                     # lane-dense out
    add_bias(p_act[idx + 1])

    bias_slab = jnp.concatenate(bias_rows, axis=0)
    pad_rows = _round_up(bias_slab.shape[0], 8) - bias_slab.shape[0]
    bias_slab = jnp.pad(bias_slab, ((0, pad_rows), (0, 0)))
    weights = [w.astype(weight_dtype) for w in weights]
    dims = dict(FEATW=FEATW, ACTW=ACTW, OUTW=OUTW)
    return weights, bias_slab, dims


# ------------------------------- wrapper --------------------------------------

def actor_model_forward(observation, z, std, p_pre1, p_pre2, p_act,
                        pre_hidden_layers, actor_hidden_layers,
                        batch_tile=None, use_bf16=True):
    B, obs_dim = observation.shape
    z_dim = z.shape[-1]
    H = p_pre1[0].shape[1]
    A = p_act[-2].shape[1]
    d_in = obs_dim + z_dim

    weight_dtype = jnp.bfloat16 if use_bf16 else jnp.float32
    weights, bias_slab, dims = _fuse_params(
        p_pre1, p_pre2, p_act, z_dim, pre_hidden_layers, actor_hidden_layers,
        weight_dtype)
    OUTW = dims["OUTW"]
    assert len(weights) == pre_hidden_layers + actor_hidden_layers + 2

    # Single concatenated input: one DMA stream, one K=(obs+z) matmul pass.
    x = jnp.concatenate([observation, z], axis=-1).astype(jnp.float32)

    # Batch tiling: a single big tile for small/medium B (grid steps are a
    # serial loop on single-TC v5e/v6e; splitting tiny batches only adds
    # ~0.35us/step + weight-buffer churn); 4096-row tiles for large B.
    if batch_tile is None:
        batch_tile = min(_round_up(B, 8), 4096)
    grid = pl.cdiv(B, batch_tile)
    B_pad = grid * batch_tile
    if B_pad != B:
        x = jnp.pad(x, ((0, B_pad - B), (0, 0)))

    kernel = _make_kernel(pre_hidden_layers, actor_hidden_layers, H,
                          dims["FEATW"], dims["ACTW"], OUTW)

    in_specs = [pl.BlockSpec((batch_tile, d_in), lambda i: (i, 0))]
    in_specs += [pl.BlockSpec(w.shape, lambda i: (0, 0)) for w in weights]
    in_specs += [pl.BlockSpec(bias_slab.shape, lambda i: (0, 0))]
    out_specs = pl.BlockSpec((batch_tile, OUTW), lambda i: (i, 0))
    out_shape = jax.ShapeDtypeStruct((B_pad, OUTW), jnp.float32)

    # Explicit VMEM budget with headroom, capped well under v7x's 64 MiB/TC.
    weight_bytes = (sum(int(w.size) * w.dtype.itemsize for w in weights)
                    + int(bias_slab.size) * 4)
    io_bytes = batch_tile * (d_in + OUTW) * 4
    act_bytes = batch_tile * (2 * H + dims["FEATW"] + dims["ACTW"] + OUTW) * 4
    vmem_need = 2 * (weight_bytes + io_bytes) + act_bytes
    vmem_limit = int(min(max(2 * vmem_need, 16 * 1024 * 1024), 48 * 1024 * 1024))

    cost = pl.CostEstimate(
        flops=2 * B_pad * sum(int(w.shape[0]) * int(w.shape[1]) for w in weights),
        transcendentals=B_pad * (2 * H + OUTW + 2),    # tanh layers + 2 rsqrt/row
        bytes_accessed=4 * B_pad * (d_in + OUTW) + grid * weight_bytes,
    )

    # TODO(synk): on v7x (2 TensorCores) pass dimension_semantics=(pltpu.CORE_PARALLEL,)
    # (or pl.core_map over a 2-core mesh) with grid >= 2 to shard the batch axis.
    mu_full = pl.pallas_call(
        kernel,
        grid=(grid,),
        in_specs=in_specs,
        out_specs=out_specs,
        out_shape=out_shape,
        compiler_params=pltpu.CompilerParams(
            dimension_semantics=("parallel",),
            vmem_limit_bytes=vmem_limit),
        cost_estimate=cost,
    )(x, *weights, bias_slab)

    mu = mu_full[:B, :A]
    action = mu  # clip(tanh(mu), -1, 1) == tanh(mu) exactly (sample=False path)

    # TODO(synk): TruncatedNormal sample()/rsample() (sample=True path) is stochastic
    # host-side logic; only the deterministic mean path is computed in-kernel.
    # The "distribution" is returned as its parameters (mu, std).
    std_arr = jnp.full_like(mu, std)
    return action, (mu, std_arr)


# ----------------------------- pure-JAX reference -----------------------------

def _reference(observation, z, p1, p2, pa, pre_layers, actor_layers):
    def preproc(parts, params):
        n = len(parts)
        h = sum(parts[i] @ params[i] for i in range(n)) + params[n]
        g, b = params[n + 1], params[n + 2]
        mu_ = jnp.mean(h, -1, keepdims=True)
        var = jnp.mean((h - mu_) ** 2, -1, keepdims=True)
        h = jnp.tanh((h - mu_) * jax.lax.rsqrt(var + _LN_EPS) * g + b)
        idx = n + 3
        for _ in range(pre_layers - 1):
            h = jnp.maximum(h @ params[idx] + params[idx + 1], 0.0); idx += 2
        return h @ params[idx] + params[idx + 1]

    f1 = preproc((observation,), p1)
    f2 = preproc((observation, z), p2)
    h = jnp.maximum(f1 @ pa[0] + f2 @ pa[1] + pa[2], 0.0)
    idx = 3
    for _ in range(actor_layers - 1):
        h = jnp.maximum(h @ pa[idx] + pa[idx + 1], 0.0); idx += 2
    mu = jnp.tanh(h @ pa[idx] + pa[idx + 1])
    return jnp.clip(mu, -1.0, 1.0), mu


# ---------------------------------- main ---------------------------------------

if __name__ == "__main__":
    # small shapes consistent with the module
    batch = 16
    observation_length = 32
    z_dimension = 16
    preprocessor_hidden_dimension = 64
    preprocessor_feature_space_dimension = 32
    number_of_features = 2                 # h = cat([obs_emb, obs_z_emb]) -> 2 features
    preprocessor_hidden_layers = 2
    actor_hidden_dimension = 64
    actor_hidden_layers = 2
    action_length = 8
    std = 0.2

    key = jax.random.PRNGKey(0)
    k_obs, k_z, k_p1, k_p2, k_a = jax.random.split(key, 5)
    observation = jax.random.normal(k_obs, (batch, observation_length), jnp.float32)
    z = jax.random.normal(k_z, (batch, z_dimension), jnp.float32)

    p_pre1 = make_preproc_params(k_p1, (observation_length,),
                                 preprocessor_hidden_dimension,
                                 preprocessor_feature_space_dimension,
                                 preprocessor_hidden_layers)
    p_pre2 = make_preproc_params(k_p2, (observation_length, z_dimension),
                                 preprocessor_hidden_dimension,
                                 preprocessor_feature_space_dimension,
                                 preprocessor_hidden_layers)
    p_act = make_actor_params(k_a,
                              (preprocessor_feature_space_dimension,) * number_of_features,
                              actor_hidden_dimension, action_length, actor_hidden_layers)

    ref_action, ref_mu = _reference(observation, z, p_pre1, p_pre2, p_act,
                                    preprocessor_hidden_layers, actor_hidden_layers)

    # Exact path (f32 matmul operands) -> tight tolerance.
    action32, (mu32, _) = actor_model_forward(
        observation, z, std, p_pre1, p_pre2, p_act,
        preprocessor_hidden_layers, actor_hidden_layers, use_bf16=False)
    action32 = jax.block_until_ready(action32)
    assert action32.shape == (batch, action_length)
    assert jnp.max(jnp.abs(action32 - ref_action)) < 1e-4
    assert jnp.max(jnp.abs(mu32 - ref_mu)) < 1e-4

    # Fast path (bf16 MXU operands) -> deliberate accuracy trade-off (~1e-2).
    action, (mu, std_arr) = actor_model_forward(
        observation, z, std, p_pre1, p_pre2, p_act,
        preprocessor_hidden_layers, actor_hidden_layers, use_bf16=True)
    action = jax.block_until_ready(action)
    assert action.shape == (batch, action_length)
    assert std_arr.shape == (batch, action_length)
    assert jnp.max(jnp.abs(action - ref_action)) < 5e-2
    assert jnp.max(jnp.abs(mu - ref_mu)) < 5e-2

    print("KERNEL_OK")
</pallas_src>

<mosaic_0001>
module attributes {stable_mosaic.version = 11 : i64} {
  func.func @kernel(%arg0: i32, %arg1: memref<16x48xf32, #tpu.memory_space<vmem>>, %arg2: memref<48x128xf32, #tpu.memory_space<vmem>>, %arg3: memref<128x128xf32, #tpu.memory_space<vmem>>, %arg4: memref<128x128xf32, #tpu.memory_space<vmem>>, %arg5: memref<128x128xf32, #tpu.memory_space<vmem>>, %arg6: memref<128x128xf32, #tpu.memory_space<vmem>>, %arg7: memref<128x128xf32, #tpu.memory_space<vmem>>, %arg8: memref<8x128xf32, #tpu.memory_space<vmem>>, %arg9: memref<16x128xf32, #tpu.memory_space<vmem>>) attributes {dimension_semantics = [#tpu.dimension_semantics<parallel>], iteration_bounds = array<i64: 1>, scalar_prefetch = 0 : i64, scratch_operands = 0 : i64, tpu.core_type = #tpu.core_type<tc>, window_params = [{transform_indices = @transform_0, window_bounds = array<i64: 16, 48>}, {pipeline_mode = #tpu.pipeline_mode<synchronous>, transform_indices = @transform_1, window_bounds = array<i64: 48, 128>}, {pipeline_mode = #tpu.pipeline_mode<synchronous>, transform_indices = @transform_2, window_bounds = array<i64: 128, 128>}, {pipeline_mode = #tpu.pipeline_mode<synchronous>, transform_indices = @transform_3, window_bounds = array<i64: 128, 128>}, {pipeline_mode = #tpu.pipeline_mode<synchronous>, transform_indices = @transform_4, window_bounds = array<i64: 128, 128>}, {pipeline_mode = #tpu.pipeline_mode<synchronous>, transform_indices = @transform_5, window_bounds = array<i64: 128, 128>}, {pipeline_mode = #tpu.pipeline_mode<synchronous>, transform_indices = @transform_6, window_bounds = array<i64: 128, 128>}, {pipeline_mode = #tpu.pipeline_mode<synchronous>, transform_indices = @transform_7, window_bounds = array<i64: 8, 128>}, {transform_indices = @transform_8, window_bounds = array<i64: 16, 128>}]} {
    %c0 = arith.constant 0 : index
    %c0_0 = arith.constant 0 : index
    %0 = vector.load %arg1[%c0, %c0_0] : memref<16x48xf32, #tpu.memory_space<vmem>>, vector<16x48xf32>
    %c0_1 = arith.constant 0 : index
    %c0_2 = arith.constant 0 : index
    %1 = vector.load %arg2[%c0_1, %c0_2] : memref<48x128xf32, #tpu.memory_space<vmem>>, vector<48x128xf32>
    %cst = arith.constant dense<0.000000e+00> : vector<16x128xf32>
    %2 = tpu.matmul %0, %1, %cst {dimension_numbers = #tpu.dot_dimension_numbers<[1], [0], [0], [1], [0, 0, 1, 1], [], []>} : vector<16x48xf32>, vector<48x128xf32>, vector<16x128xf32> -> vector<16x128xf32>
    %c0_3 = arith.constant 0 : index
    %c0_4 = arith.constant 0 : index
    %3 = vector.load %arg8[%c0_3, %c0_4] : memref<8x128xf32, #tpu.memory_space<vmem>>, vector<1x128xf32>
    %4 = vector.broadcast %3 : vector<1x128xf32> to vector<16x128xf32>
    %5 = arith.addf %2, %4 : vector<16x128xf32>
    %c1 = arith.constant 1 : index
    %c0_5 = arith.constant 0 : index
    %6 = vector.load %arg8[%c1, %c0_5] : memref<8x128xf32, #tpu.memory_space<vmem>>, vector<1x128xf32>
    %c2 = arith.constant 2 : index
    %c0_6 = arith.constant 0 : index
    %7 = vector.load %arg8[%c2, %c0_6] : memref<8x128xf32, #tpu.memory_space<vmem>>, vector<1x128xf32>
    %8 = tpu.iota {dimensions = array<i32: 1>} : vector<16x128xi32>
    %c64_i32 = arith.constant 64 : i32
    %9 = vector.broadcast %c64_i32 : i32 to vector<16x128xi32>
    %10 = arith.cmpi slt, %8, %9 : vector<16x128xi32>
    %cst_7 = arith.constant 0.000000e+00 : f32
    %11 = vector.broadcast %cst_7 : f32 to vector<16x128xf32>
    %12 = arith.select %10, %5, %11 : vector<16x128xi1>, vector<16x128xf32>
    %cst_8 = arith.constant dense<0.000000e+00> : vector<16xf32>
    %13 = vector.multi_reduction <add>, %5, %cst_8 [1] : vector<16x128xf32> to vector<16xf32>
    %14 = vector.shape_cast %13 : vector<16xf32> to vector<16x1xf32>
    %cst_9 = arith.constant dense<0.000000e+00> : vector<16xf32>
    %15 = vector.multi_reduction <add>, %12, %cst_9 [1] : vector<16x128xf32> to vector<16xf32>
    %16 = vector.shape_cast %15 : vector<16xf32> to vector<16x1xf32>
    %17 = arith.subf %14, %16 : vector<16x1xf32>
    %18 = vector.shape_cast %16 : vector<16x1xf32> to vector<16x1xf32>
    %19 = vector.broadcast %18 : vector<16x1xf32> to vector<16x128xf32>
    %20 = vector.shape_cast %17 : vector<16x1xf32> to vector<16x1xf32>
    %21 = vector.broadcast %20 : vector<16x1xf32> to vector<16x128xf32>
    %22 = arith.select %10, %19, %21 : vector<16x128xi1>, vector<16x128xf32>
    %cst_10 = arith.constant 1.562500e-02 : f32
    %23 = vector.broadcast %cst_10 : f32 to vector<16x128xf32>
    %24 = arith.mulf %22, %23 : vector<16x128xf32>
    %25 = arith.subf %5, %24 : vector<16x128xf32>
    %cst_11 = arith.constant 0.000000e+00 : f32
    %26 = vector.broadcast %cst_11 : f32 to vector<16x128xf32>
    %27 = arith.select %10, %25, %26 : vector<16x128xi1>, vector<16x128xf32>
    %28 = arith.mulf %25, %25 : vector<16x128xf32>
    %cst_12 = arith.constant dense<0.000000e+00> : vector<16xf32>
    %29 = vector.multi_reduction <add>, %28, %cst_12 [1] : vector<16x128xf32> to vector<16xf32>
    %30 = vector.shape_cast %29 : vector<16xf32> to vector<16x1xf32>
    %31 = arith.mulf %27, %27 : vector<16x128xf32>
    %cst_13 = arith.constant dense<0.000000e+00> : vector<16xf32>
    %32 = vector.multi_reduction <add>, %31, %cst_13 [1] : vector<16x128xf32> to vector<16xf32>
    %33 = vector.shape_cast %32 : vector<16xf32> to vector<16x1xf32>
    %cst_14 = arith.constant 1.562500e-02 : f32
    %34 = vector.broadcast %cst_14 : f32 to vector<16x1xf32>
    %35 = arith.mulf %33, %34 : vector<16x1xf32>
    %cst_15 = arith.constant 9.99999974E-6 : f32
    %36 = vector.broadcast %cst_15 : f32 to vector<16x1xf32>
    %37 = arith.addf %35, %36 : vector<16x1xf32>
    %38 = math.rsqrt %37 : vector<16x1xf32>
    %39 = arith.subf %30, %33 : vector<16x1xf32>
    %cst_16 = arith.constant 1.562500e-02 : f32
    %40 = vector.broadcast %cst_16 : f32 to vector<16x1xf32>
    %41 = arith.mulf %39, %40 : vector<16x1xf32>
    %cst_17 = arith.constant 9.99999974E-6 : f32
    %42 = vector.broadcast %cst_17 : f32 to vector<16x1xf32>
    %43 = arith.addf %41, %42 : vector<16x1xf32>
    %44 = math.rsqrt %43 : vector<16x1xf32>
    %45 = vector.shape_cast %38 : vector<16x1xf32> to vector<16x1xf32>
    %46 = vector.broadcast %45 : vector<16x1xf32> to vector<16x128xf32>
    %47 = vector.shape_cast %44 : vector<16x1xf32> to vector<16x1xf32>
    %48 = vector.broadcast %47 : vector<16x1xf32> to vector<16x128xf32>
    %49 = arith.select %10, %46, %48 : vector<16x128xi1>, vector<16x128xf32>
    %50 = arith.mulf %25, %49 : vector<16x128xf32>
    %51 = vector.broadcast %6 : vector<1x128xf32> to vector<16x128xf32>
    %52 = arith.mulf %50, %51 : vector<16x128xf32>
    %53 = vector.broadcast %7 : vector<1x128xf32> to vector<16x128xf32>
    %54 = arith.addf %52, %53 : vector<16x128xf32>
    %55 = math.tanh %54 : vector<16x128xf32>
    %c0_18 = arith.constant 0 : index
    %c0_19 = arith.constant 0 : index
    %56 = vector.load %arg3[%c0_18, %c0_19] : memref<128x128xf32, #tpu.memory_space<vmem>>, vector<128x128xf32>
    %cst_20 = arith.constant dense<0.000000e+00> : vector<16x128xf32>
    %57 = tpu.matmul %55, %56, %cst_20 {dimension_numbers = #tpu.dot_dimension_numbers<[1], [0], [0], [1], [0, 0, 1, 1], [], []>} : vector<16x128xf32>, vector<128x128xf32>, vector<16x128xf32> -> vector<16x128xf32>
    %c3 = arith.constant 3 : index
    %c0_21 = arith.constant 0 : index
    %58 = vector.load %arg8[%c3, %c0_21] : memref<8x128xf32, #tpu.memory_space<vmem>>, vector<1x128xf32>
    %59 = vector.broadcast %58 : vector<1x128xf32> to vector<16x128xf32>
    %60 = arith.addf %57, %59 : vector<16x128xf32>
    %cst_22 = arith.constant 0.000000e+00 : f32
    %61 = vector.broadcast %cst_22 : f32 to vector<16x128xf32>
    %62 = arith.maximumf %60, %61 : vector<16x128xf32>
    %c0_23 = arith.constant 0 : index
    %c0_24 = arith.constant 0 : index
    %63 = vector.load %arg4[%c0_23, %c0_24] : memref<128x128xf32, #tpu.memory_space<vmem>>, vector<128x128xf32>
    %cst_25 = arith.constant dense<0.000000e+00> : vector<16x128xf32>
    %64 = tpu.matmul %62, %63, %cst_25 {dimension_numbers = #tpu.dot_dimension_numbers<[1], [0], [0], [1], [0, 0, 1, 1], [], []>} : vector<16x128xf32>, vector<128x128xf32>, vector<16x128xf32> -> vector<16x128xf32>
    %c4 = arith.constant 4 : index
    %c0_26 = arith.constant 0 : index
    %65 = vector.load %arg8[%c4, %c0_26] : memref<8x128xf32, #tpu.memory_space<vmem>>, vector<1x128xf32>
    %66 = vector.broadcast %65 : vector<1x128xf32> to vector<16x128xf32>
    %67 = arith.addf %64, %66 : vector<16x128xf32>
    %c0_27 = arith.constant 0 : index
    %c0_28 = arith.constant 0 : index
    %68 = vector.load %arg5[%c0_27, %c0_28] : memref<128x128xf32, #tpu.memory_space<vmem>>, vector<128x128xf32>
    %cst_29 = arith.constant dense<0.000000e+00> : vector<16x128xf32>
    %69 = tpu.matmul %67, %68, %cst_29 {dimension_numbers = #tpu.dot_dimension_numbers<[1], [0], [0], [1], [0, 0, 1, 1], [], []>} : vector<16x128xf32>, vector<128x128xf32>, vector<16x128xf32> -> vector<16x128xf32>
    %c5 = arith.constant 5 : index
    %c0_30 = arith.constant 0 : index
    %70 = vector.load %arg8[%c5, %c0_30] : memref<8x128xf32, #tpu.memory_space<vmem>>, vector<1x128xf32>
    %71 = vector.broadcast %70 : vector<1x128xf32> to vector<16x128xf32>
    %72 = arith.addf %69, %71 : vector<16x128xf32>
    %cst_31 = arith.constant 0.000000e+00 : f32
    %73 = vector.broadcast %cst_31 : f32 to vector<16x128xf32>
    %74 = arith.maximumf %72, %73 : vector<16x128xf32>
    %c0_32 = arith.constant 0 : index
    %c0_33 = arith.constant 0 : index
    %75 = vector.load %arg6[%c0_32, %c0_33] : memref<128x128xf32, #tpu.memory_space<vmem>>, vector<128x128xf32>
    %cst_34 = arith.constant dense<0.000000e+00> : vector<16x128xf32>
    %76 = tpu.matmul %74, %75, %cst_34 {dimension_numbers = #tpu.dot_dimension_numbers<[1], [0], [0], [1], [0, 0, 1, 1], [], []>} : vector<16x128xf32>, vector<128x128xf32>, vector<16x128xf32> -> vector<16x128xf32>
    %c6 = arith.constant 6 : index
    %c0_35 = arith.constant 0 : index
    %77 = vector.load %arg8[%c6, %c0_35] : memref<8x128xf32, #tpu.memory_space<vmem>>, vector<1x128xf32>
    %78 = vector.broadcast %77 : vector<1x128xf32> to vector<16x128xf32>
    %79 = arith.addf %76, %78 : vector<16x128xf32>
    %cst_36 = arith.constant 0.000000e+00 : f32
    %80 = vector.broadcast %cst_36 : f32 to vector<16x128xf32>
    %81 = arith.maximumf %79, %80 : vector<16x128xf32>
    %c0_37 = arith.constant 0 : index
    %c0_38 = arith.constant 0 : index
    %82 = vector.load %arg7[%c0_37, %c0_38] : memref<128x128xf32, #tpu.memory_space<vmem>>, vector<128x128xf32>
    %cst_39 = arith.constant dense<0.000000e+00> : vector<16x128xf32>
    %83 = tpu.matmul %81, %82, %cst_39 {dimension_numbers = #tpu.dot_dimension_numbers<[1], [0], [0], [1], [0, 0, 1, 1], [], []>} : vector<16x128xf32>, vector<128x128xf32>, vector<16x128xf32> -> vector<16x128xf32>
    %c7 = arith.constant 7 : index
    %c0_40 = arith.constant 0 : index
    %84 = vector.load %arg8[%c7, %c0_40] : memref<8x128xf32, #tpu.memory_space<vmem>>, vector<1x128xf32>
    %85 = vector.broadcast %84 : vector<1x128xf32> to vector<16x128xf32>
    %86 = arith.addf %83, %85 : vector<16x128xf32>
    %87 = math.tanh %86 : vector<16x128xf32>
    %c0_41 = arith.constant 0 : index
    %c0_42 = arith.constant 0 : index
    %88 = vector.load %arg9[%c0_41, %c0_42] : memref<16x128xf32, #tpu.memory_space<vmem>>, vector<16x128xf32>
    tpu.vector_store %arg9[%c0_41, %c0_42], %87 {strides = array<i32>} : memref<16x128xf32, #tpu.memory_space<vmem>>, vector<16x128xf32>,
    return
  }
  func.func @transform_0(%arg0: i32) -> (i32, i32) {
    %c0_i32 = arith.constant 0 : i32
    %c0_i32_0 = arith.constant 0 : i32
    return %arg0, %c0_i32 : i32, i32
  }
  func.func @transform_1(%arg0: i32) -> (i32, i32) {
    %c0_i32 = arith.constant 0 : i32
    %c0_i32_0 = arith.constant 0 : i32
    %c0_i32_1 = arith.constant 0 : i32
    return %c0_i32, %c0_i32_0 : i32, i32
  }
  func.func @transform_2(%arg0: i32) -> (i32, i32) {
    %c0_i32 = arith.constant 0 : i32
    %c0_i32_0 = arith.constant 0 : i32
    %c0_i32_1 = arith.constant 0 : i32
    return %c0_i32, %c0_i32_0 : i32, i32
  }
  func.func @transform_3(%arg0: i32) -> (i32, i32) {
    %c0_i32 = arith.constant 0 : i32
    %c0_i32_0 = arith.constant 0 : i32
    %c0_i32_1 = arith.constant 0 : i32
    return %c0_i32, %c0_i32_0 : i32, i32
  }
  func.func @transform_4(%arg0: i32) -> (i32, i32) {
    %c0_i32 = arith.constant 0 : i32
    %c0_i32_0 = arith.constant 0 : i32
    %c0_i32_1 = arith.constant 0 : i32
    return %c0_i32, %c0_i32_0 : i32, i32
  }
  func.func @transform_5(%arg0: i32) -> (i32, i32) {
    %c0_i32 = arith.constant 0 : i32
    %c0_i32_0 = arith.constant 0 : i32
    %c0_i32_1 = arith.constant 0 : i32
    return %c0_i32, %c0_i32_0 : i32, i32
  }
  func.func @transform_6(%arg0: i32) -> (i32, i32) {
    %c0_i32 = arith.constant 0 : i32
    %c0_i32_0 = arith.constant 0 : i32
    %c0_i32_1 = arith.constant 0 : i32
    return %c0_i32, %c0_i32_0 : i32, i32
  }
  func.func @transform_7(%arg0: i32) -> (i32, i32) {
    %c0_i32 = arith.constant 0 : i32
    %c0_i32_0 = arith.constant 0 : i32
    %c0_i32_1 = arith.constant 0 : i32
    return %c0_i32, %c0_i32_0 : i32, i32
  }
  func.func @transform_8(%arg0: i32) -> (i32, i32) {
    %c0_i32 = arith.constant 0 : i32
    %c0_i32_0 = arith.constant 0 : i32
    return %arg0, %c0_i32 : i32, i32
  }
}

</mosaic_0001>

<llo_original>
// kernel: tpu_custom_call.1
$region0: #{tpu_custom_call.1}
  #allocation0 [shape = 'u32[]', space=smem, size = 0x4, offset = 0x4, fixed_abs, tag = 'smem constant byte address 0x4 - core index']
  #allocation1 [shape = 'u32[144,128]{1,0:T(1,128)}', space=vmem, size = 0x12000, scoped, tag = 'internal scratch']
  %s0 = inlined_call_operand.hbm [shape: f32[16,48], index: 0, kind: input, shape index: {}]
  %s1 = inlined_call_operand.hbm [shape: f32[48,128], index: 1, kind: input, shape index: {}]
  %s2 = inlined_call_operand.hbm [shape: f32[128,128], index: 2, kind: input, shape index: {}]
  %s3 = inlined_call_operand.hbm [shape: f32[128,128], index: 3, kind: input, shape index: {}]
  %s4 = inlined_call_operand.hbm [shape: f32[128,128], index: 4, kind: input, shape index: {}]
  %s5 = inlined_call_operand.hbm [shape: f32[128,128], index: 5, kind: input, shape index: {}]
  %s6 = inlined_call_operand.hbm [shape: f32[128,128], index: 6, kind: input, shape index: {}]
  %s7 = inlined_call_operand.vmem [shape: f32[8,128], index: 7, kind: input, shape index: {}]
  %s8 = inlined_call_operand.hbm [shape: f32[16,128], index: 8, kind: output, shape index: {}]
  %s9 = sld [smem:[#allocation0]]
  $region70: #{tpu_custom_call.1} parent=0
    _
  %s11 = ssub.s32 1, %s9
  %s12 = scalar_select 0, %s11, %s9
  $region1: #{tpu_custom_call.1} parent=0
    #allocation2 [shape = 'u8[8192]{0}', space=vmem, size = 0x2000, scoped, tag = 'input window, operand 0, single buffered']
    #allocation3 [shape = 's32[1]{0}', space=sflag, size = 0x4, scoped, tag = 'scoped memory for tpu_custom_call.1']
    #allocation4 [shape = 's32[1]{0}', space=sflag, size = 0x4, scoped, tag = 'scoped memory for tpu_custom_call.1']
    #allocation5 [shape = 'u8[24576]{0}', space=vmem, size = 0x6000, scoped, tag = 'input window, operand 1, single buffered']
    #allocation6 [shape = 's32[1]{0}', space=sflag, size = 0x4, scoped, tag = 'scoped memory for tpu_custom_call.1']
    #allocation7 [shape = 'u8[65536]{0}', space=vmem, size = 0x10000, scoped, tag = 'input window, operand 2, single buffered']
    #allocation8 [shape = 'u8[65536]{0}', space=vmem, size = 0x10000, scoped, tag = 'input window, operand 3, single buffered']
    #allocation9 [shape = 's32[1]{0}', space=sflag, size = 0x4, scoped, tag = 'scoped memory for tpu_custom_call.1']
    #allocation10 [shape = 'u8[65536]{0}', space=vmem, size = 0x10000, scoped, tag = 'input window, operand 4, single buffered']
    #allocation11 [shape = 'u8[65536]{0}', space=vmem, size = 0x10000, scoped, tag = 'input window, operand 5, single buffered']
    #allocation12 [shape = 's32[1]{0}', space=sflag, size = 0x4, scoped, tag = 'scoped memory for tpu_custom_call.1']
    #allocation13 [shape = 'u8[65536]{0}', space=vmem, size = 0x10000, scoped, tag = 'input window, operand 6, single buffered']
    #allocation14 [shape = 'u8[8192]{0}', space=vmem, size = 0x2000, scoped, tag = 'output window, operand 0, single buffered']
    %13 = vsyncpa [#allocation3], 0
    %14 = vsyncpa [#allocation6], 0
    %15 = vsyncpa [#allocation9], 0
    %16 = vsyncpa [#allocation12], 0
    %17 = vsyncpa [#allocation4], 0
    // Predicated region
    $region2: #{tpu_custom_call.1} parent=1 // pred_check
      _
    $region3: #{tpu_custom_call.1} parent=1 // pred_check_branch
      %19 = sbr.rel (0) target = $region5
    $region4: #{tpu_custom_call.1} parent=1 // pred_region
      %s21 = ssub.s32 256, 256
      %22 = vsyncadd [#allocation3], %s21
      %s23 = sshll.u32 [#allocation2], 4
      %s24 = int_to_ptr.vmem [resolvable:$true] %s23
      %29 = dma.hbm_to_vmem [thread:$0]  %s0, 256, %s24, [#allocation3], 128, 128, 8
    $region5: #{tpu_custom_call.1} parent=1 // pred_fallthru
      _
    // Predicated region
    $region6: #{tpu_custom_call.1} parent=1 // pred_check
      _
    $region7: #{tpu_custom_call.1} parent=1 // pred_check_branch
      %31 = sbr.rel (0) target = $region9
    $region8: #{tpu_custom_call.1} parent=1 // pred_region
      %s33 = ssub.s32 768, 768
      %34 = vsyncadd [#allocation6], %s33
      %s35 = sshll.u32 [#allocation5], 4
      %s36 = int_to_ptr.vmem [resolvable:$true] %s35
      %41 = dma.hbm_to_vmem [thread:$0]  %s1, 768, %s36, [#allocation6], 128, 128, 8
    $region9: #{tpu_custom_call.1} parent=1 // pred_fallthru
      _
    // Predicated region
    $region10: #{tpu_custom_call.1} parent=1 // pred_check
      _
    $region11: #{tpu_custom_call.1} parent=1 // pred_check_branch
      %43 = sbr.rel (0) target = $region13
    $region12: #{tpu_custom_call.1} parent=1 // pred_region
      %s45 = ssub.s32 2048, 2048
      %46 = vsyncadd [#allocation6], %s45
      %s47 = sshll.u32 [#allocation7], 4
      %s48 = int_to_ptr.vmem [resolvable:$true] %s47
      %53 = dma.hbm_to_vmem [thread:$0]  %s2, 2048, %s48, [#allocation6], 128, 128, 8
    $region13: #{tpu_custom_call.1} parent=1 // pred_fallthru
      _
    // Predicated region
    $region14: #{tpu_custom_call.1} parent=1 // pred_check
      _
    $region15: #{tpu_custom_call.1} parent=1 // pred_check_branch
      %55 = sbr.rel (0) target = $region17
    $region16: #{tpu_custom_call.1} parent=1 // pred_region
      %s57 = ssub.s32 2048, 2048
      %58 = vsyncadd [#allocation9], %s57
      %s59 = sshll.u32 [#allocation8], 4
      %s60 = int_to_ptr.vmem [resolvable:$true] %s59
      %65 = dma.hbm_to_vmem [thread:$0]  %s3, 2048, %s60, [#allocation9], 128, 128, 8
    $region17: #{tpu_custom_call.1} parent=1 // pred_fallthru
      _
    // Predicated region
    $region18: #{tpu_custom_call.1} parent=1 // pred_check
      _
    $region19: #{tpu_custom_call.1} parent=1 // pred_check_branch
      %67 = sbr.rel (0) target = $region21
    $region20: #{tpu_custom_call.1} parent=1 // pred_region
      %s69 = ssub.s32 2048, 2048
      %70 = vsyncadd [#allocation9], %s69
      %s71 = sshll.u32 [#allocation10], 4
      %s72 = int_to_ptr.vmem [resolvable:$true] %s71
      %77 = dma.hbm_to_vmem [thread:$0]  %s4, 2048, %s72, [#allocation9], 128, 128, 8
    $region21: #{tpu_custom_call.1} parent=1 // pred_fallthru
      _
    // Predicated region
    $region22: #{tpu_custom_call.1} parent=1 // pred_check
      _
    $region23: #{tpu_custom_call.1} parent=1 // pred_check_branch
      %79 = sbr.rel (0) target = $region25
    $region24: #{tpu_custom_call.1} parent=1 // pred_region
      %s81 = ssub.s32 2048, 2048
      %82 = vsyncadd [#allocation12], %s81
      %s83 = sshll.u32 [#allocation11], 4
      %s84 = int_to_ptr.vmem [resolvable:$true] %s83
      %89 = dma.hbm_to_vmem [thread:$0]  %s5, 2048, %s84, [#allocation12], 128, 128, 8
    $region25: #{tpu_custom_call.1} parent=1 // pred_fallthru
      _
    // Predicated region
    $region26: #{tpu_custom_call.1} parent=1 // pred_check
      _
    $region27: #{tpu_custom_call.1} parent=1 // pred_check_branch
      %91 = sbr.rel (0) target = $region29
    $region28: #{tpu_custom_call.1} parent=1 // pred_region
      %s93 = ssub.s32 2048, 2048
      %94 = vsyncadd [#allocation12], %s93
      %s95 = sshll.u32 [#allocation13], 4
      %s96 = int_to_ptr.vmem [resolvable:$true] %s95
      %101 = dma.hbm_to_vmem [thread:$0]  %s6, 2048, %s96, [#allocation12], 128, 128, 8
    $region29: #{tpu_custom_call.1} parent=1 // pred_fallthru
      _
    // Predicated region
    $region30: #{tpu_custom_call.1} parent=1 // pred_check
      _
    $region31: #{tpu_custom_call.1} parent=1 // pred_check_branch
      %103 = sbr.rel (0) target = $region33
    $region32: #{tpu_custom_call.1} parent=1 // pred_region
      _
    $region33: #{tpu_custom_call.1} parent=1 // pred_fallthru
      _
    // Predicated region
    $region34: #{tpu_custom_call.1} parent=1 // pred_check
      _
    $region35: #{tpu_custom_call.1} parent=1 // pred_check_branch
      %105 = sbr.rel (0) target = $region37
    $region36: #{tpu_custom_call.1} parent=1 // pred_region
      %106 = dma.done [#allocation3], 256
    $region37: #{tpu_custom_call.1} parent=1 // pred_fallthru
      _
    // Predicated region
    $region38: #{tpu_custom_call.1} parent=1 // pred_check
      _
    $region39: #{tpu_custom_call.1} parent=1 // pred_check_branch
      %108 = sbr.rel (0) target = $region41
    $region40: #{tpu_custom_call.1} parent=1 // pred_region
      %109 = dma.done [#allocation6], 768
    $region41: #{tpu_custom_call.1} parent=1 // pred_fallthru
      _
    // Predicated region
    $region42: #{tpu_custom_call.1} parent=1 // pred_check
      _
    $region43: #{tpu_custom_call.1} parent=1 // pred_check_branch
      %111 = sbr.rel (0) target = $region45
    $region44: #{tpu_custom_call.1} parent=1 // pred_region
      %112 = dma.done [#allocation6], 2048
    $region45: #{tpu_custom_call.1} parent=1 // pred_fallthru
      _
    // Predicated region
    $region46: #{tpu_custom_call.1} parent=1 // pred_check
      _
    $region47: #{tpu_custom_call.1} parent=1 // pred_check_branch
      %114 = sbr.rel (0) target = $region49
    $region48: #{tpu_custom_call.1} parent=1 // pred_region
      %115 = dma.done [#allocation9], 2048
    $region49: #{tpu_custom_call.1} parent=1 // pred_fallthru
      _
    // Predicated region
    $region50: #{tpu_custom_call.1} parent=1 // pred_check
      _
    $region51: #{tpu_custom_call.1} parent=1 // pred_check_branch
      %117 = sbr.rel (0) target = $region53
    $region52: #{tpu_custom_call.1} parent=1 // pred_region
      %118 = dma.done [#allocation9], 2048
    $region53: #{tpu_custom_call.1} parent=1 // pred_fallthru
      _
    // Predicated region
    $region54: #{tpu_custom_call.1} parent=1 // pred_check
      _
    $region55: #{tpu_custom_call.1} parent=1 // pred_check_branch
      %120 = sbr.rel (0) target = $region57
    $region56: #{tpu_custom_call.1} parent=1 // pred_region
      %121 = dma.done [#allocation12], 2048
    $region57: #{tpu_custom_call.1} parent=1 // pred_fallthru
      _
    // Predicated region
    $region58: #{tpu_custom_call.1} parent=1 // pred_check
      _
    $region59: #{tpu_custom_call.1} parent=1 // pred_check_branch
      %123 = sbr.rel (0) target = $region61
    $region60: #{tpu_custom_call.1} parent=1 // pred_region
      %124 = dma.done [#allocation12], 2048
    $region61: #{tpu_custom_call.1} parent=1 // pred_fallthru
      _
    %v125 = vld [vmem:[#allocation2] sm:$0xff]
    %v126 = vld [vmem:[#allocation2 + $0x8] sm:$0xff]
    %v127 = vld [vmem:[#allocation5] sm:$0xff]
    %v128 = vld [vmem:[#allocation5 + $0x8] sm:$0xff]
    %v129 = vld [vmem:[#allocation5 + $0x10] sm:$0xff]
    %v130 = vld [vmem:[#allocation5 + $0x18] sm:$0xff]
    %v131 = vld [vmem:[#allocation5 + $0x20] sm:$0xff]
    %v132 = vld [vmem:[#allocation5 + $0x28] sm:$0xff]
    %v133 = vld [vmem:[%s7] sm:$0x1]
    %v134 = vlaneseq
    %v135 = vshrl.u32 %v134, 7
    %v136 = vsub.s32 0, %v135
    %v137 = vrot.slane %v133, %v136
    %vm138 = vcmask 392192
    %v140 = vsel %vm138, %v125, 0
    %v143 = vsel %vm138, %v126, 0
    %145 = vmatprep.subr.mxu0 0.0
    %146 = vmatpush1.msra.mxu0 0.0
    %147 = vmatprep.subr.mxu0 0.0
    %148 = vmatpush1.msra.mxu0 0.0
    %149 = vmatprep.subr.mxu0 0.0
    %150 = vmatpush1.msra.mxu0 0.0
    %151 = vmatprep.subr.mxu0 0.0
    %152 = vmatpush1.msra.mxu0 0.0
    %153 = vmatprep.subr.mxu0 0.0
    %154 = vmatpush1.msra.mxu0 0.0
    %155 = vmatprep.subr.mxu0 0.0
    %156 = vmatpush1.msra.mxu0 0.0
    %157 = vmatprep.subr.mxu0 0.0
    %158 = vmatpush1.msra.mxu0 0.0
    %159 = vmatprep.subr.mxu0 0.0
    %160 = vmatpush1.msra.mxu0 0.0
    %161 = vmatprep.subr.mxu0 0.0
    %162 = vmatpush1.msra.mxu0 0.0
    %163 = vmatprep.subr.mxu0 0.0
    %164 = vmatpush1.msra.mxu0 0.0
    %165 = vmatprep.subr.mxu0 0.0
    %166 = vmatpush1.msra.mxu0 %v132
    %167 = vmatprep.subr.mxu0 0.0
    %168 = vmatpush1.msra.mxu0 %v131
    %169 = vmatprep.subr.mxu0 0.0
    %170 = vmatpush1.msra.mxu0 %v130
    %171 = vmatprep.subr.mxu0 0.0
    %172 = vmatpush1.msra.mxu0 %v129
    %173 = vmatprep.subr.mxu0 0.0
    %174 = vmatpush1.msra.mxu0 %v128
    %175 = vmatprep.subr.mxu0 0.0
    %176 = vmatpush1.msra.mxu0 %v127
    %177 = vmatprep.subr.mxu0 0.0
    %178 = vmatpush2.msra.mxu0 0.0
    %179 = vmatprep.subr.mxu0 0.0
    %180 = vmatpush2.msra.mxu0 0.0
    %181 = vmatprep.subr.mxu0 0.0
    %182 = vmatpush2.msra.mxu0 0.0
    %183 = vmatprep.subr.mxu0 0.0
    %184 = vmatpush2.msra.mxu0 0.0
    %185 = vmatprep.subr.mxu0 0.0
    %186 = vmatpush2.msra.mxu0 0.0
    %187 = vmatprep.subr.mxu0 0.0
    %188 = vmatpush2.msra.mxu0 0.0
    %189 = vmatprep.subr.mxu0 0.0
    %190 = vmatpush2.msra.mxu0 0.0
    %191 = vmatprep.subr.mxu0 0.0
    %192 = vmatpush2.msra.mxu0 0.0
    %193 = vmatprep.subr.mxu0 0.0
    %194 = vmatpush2.msra.mxu0 0.0
    %195 = vmatprep.subr.mxu0 0.0
    %196 = vmatpush2.msra.mxu0 0.0
    %197 = vmatprep.subr.mxu0 0.0
    %198 = vmatpush2.msra.mxu0 0.0
    %199 = vmatprep.subr.mxu0 0.0
    %200 = vmatpush2.msra.mxu0 0.0
    %201 = vmatprep.subr.mxu0 0.0
    %202 = vmatpush2.msra.mxu0 0.0
    %203 = vmatprep.subr.mxu0 0.0
    %204 = vmatpush2.msra.mxu0 0.0
    %205 = vmatprep.subr.mxu0 0.0
    %206 = vmatpush2.msra.mxu0 0.0
    %207 = vmatprep.subr.mxu0 0.0
    %208 = vmatpush2.msra.mxu0 0.0
    %209 = vmatprep.mubr.f32.mxu0 0.0
    %210 = vmatmul.mubr.f32.gmra.mxu0 %v140
    %v211 = vpop.f32.mrf.mxu0
    %v212 = vadd.f32 %v137, %v211
    %v213 = vpop.f32.mrf.mxu0
    %214 = vmatprep.mubr.f32.mxu0 0.0
    %215 = vmatmul.mubr.f32.gmra.mxu0 %v143
    %v216 = vpop.f32.mrf.mxu0
    %v217 = vadd.f32 %v137, %v216
    %v218 = vpop.f32.mrf.mxu0
    %219 = vdwg.mxu0
    %v220 = vld [vmem:[%s7 + $0x1] sm:$0x1]
    %v221 = vld [vmem:[%s7 + $0x2] sm:$0x1]
    %v222 = vlaneseq
    %v223 = vand.u32 %v222, 127
    %vm224 = vcmp.lt.s32.totalorder %v223, 64
    %v225 = vsel %vm224, %v212, 0.0
    %v226 = vsel %vm224, %v217, 0.0
    %227 = vadd.xlane.f32.xlu0 %v212
    %v228 = vpop.xlane.xlu0 %227
    %229 = vadd.xlane.f32.xlu0 %v217
    %v230 = vpop.xlane.xlu0 %229
    %231 = vadd.xlane.f32.xlu0 %v225
    %v232 = vpop.xlane.xlu0 %231
    %233 = vadd.xlane.f32.xlu0 %v226
    %v234 = vpop.xlane.xlu0 %233
    %v235 = vsub.f32 %v228, %v232
    %v236 = vsub.f32 %v230, %v234
    %v237 = vsel %vm224, %v232, %v235
    %v238 = vsel %vm224, %v234, %v236
    %v239 = vmul.f32 %v237, 0.015625
    %v240 = vmul.f32 %v238, 0.015625
    %v241 = vsub.f32 %v212, %v239
    %v242 = vsub.f32 %v217, %v240
    %v243 = vsel %vm224, %v241, 0.0
    %v244 = vsel %vm224, %v242, 0.0
    %v245 = vmul.f32 %v241, %v241
    %v246 = vmul.f32 %v242, %v242
    %247 = vadd.xlane.f32.xlu0 %v245
    %v248 = vpop.xlane.xlu0 %247
    %249 = vadd.xlane.f32.xlu0 %v246
    %v250 = vpop.xlane.xlu0 %249
    %v251 = vmul.f32 %v243, %v243
    %v252 = vmul.f32 %v244, %v244
    %253 = vadd.xlane.f32.xlu0 %v251
    %v254 = vpop.xlane.xlu0 %253
    %255 = vadd.xlane.f32.xlu0 %v252
    %v256 = vpop.xlane.xlu0 %255
    %v257 = vmul.f32 %v254, 0.015625
    %v258 = vmul.f32 %v256, 0.015625
    %v259 = vadd.f32 %v257, 1e-05
    %v260 = vadd.f32 %v258, 1e-05
    %v261 = vrsqrt.pop %v259
    %v262 = vrsqrt.pop %v260
    %v263 = vsub.f32 %v248, %v254
    %v264 = vsub.f32 %v250, %v256
    %v265 = vmul.f32 %v263, 0.015625
    %v266 = vmul.f32 %v264, 0.015625
    %v267 = vadd.f32 %v265, 1e-05
    %v268 = vadd.f32 %v266, 1e-05
    %v269 = vrsqrt.pop %v267
    %v270 = vrsqrt.pop %v268
    %v271 = vsel %vm224, %v261, %v269
    %v272 = vsel %vm224, %v262, %v270
    %v273 = vmul.f32 %v241, %v271
    %v274 = vmul.f32 %v242, %v272
    %v275 = vlaneseq
    %v276 = vshrl.u32 %v275, 7
    %v277 = vsub.s32 0, %v276
    %v278 = vrot.slane %v220, %v277
    %v279 = vmul.f32 %v273, %v278
    %v280 = vmul.f32 %v274, %v278
    %v281 = vlaneseq
    %v282 = vshrl.u32 %v281, 7
    %v283 = vsub.s32 0, %v282
    %v284 = vrot.slane %v221, %v283
    %v285 = vadd.f32 %v279, %v284
    %v286 = vadd.f32 %v280, %v284
    %v287 = vtanh.pop %v285
    %v288 = vtanh.pop %v286
    %v289 = vld [vmem:[#allocation7] sm:$0xff]
    %v290 = vld [vmem:[#allocation7 + $0x8] sm:$0xff]
    %v291 = vld [vmem:[#allocation7 + $0x10] sm:$0xff]
    %v292 = vld [vmem:[#allocation7 + $0x18] sm:$0xff]
    %v293 = vld [vmem:[#allocation7 + $0x20] sm:$0xff]
    %v294 = vld [vmem:[#allocation7 + $0x28] sm:$0xff]
    %v295 = vld [vmem:[#allocation7 + $0x30] sm:$0xff]
    %v296 = vld [vmem:[#allocation7 + $0x38] sm:$0xff]
    %v297 = vld [vmem:[#allocation7 + $0x40] sm:$0xff]
    %v298 = vld [vmem:[#allocation7 + $0x48] sm:$0xff]
    %v299 = vld [vmem:[#allocation7 + $0x50] sm:$0xff]
    %v300 = vld [vmem:[#allocation7 + $0x58] sm:$0xff]
    %v301 = vld [vmem:[#allocation7 + $0x60] sm:$0xff]
    %v302 = vld [vmem:[#allocation7 + $0x68] sm:$0xff]
    %v303 = vld [vmem:[#allocation7 + $0x70] sm:$0xff]
    %v304 = vld [vmem:[#allocation7 + $0x78] sm:$0xff]
    %v305 = vld [vmem:[%s7 + $0x3] sm:$0x1]
    %v306 = vlaneseq
    %v307 = vshrl.u32 %v306, 7
    %v308 = vsub.s32 0, %v307
    %v309 = vrot.slane %v305, %v308
    %310 = vmatprep.subr.mxu0 0.0
    %311 = vmatpush1.msra.mxu0 %v304
    %312 = vmatprep.subr.mxu0 0.0
    %313 = vmatpush1.msra.mxu0 %v303
    %314 = vmatprep.subr.mxu0 0.0
    %315 = vmatpush1.msra.mxu0 %v302
    %316 = vmatprep.subr.mxu0 0.0
    %317 = vmatpush1.msra.mxu0 %v301
    %318 = vmatprep.subr.mxu0 0.0
    %319 = vmatpush1.msra.mxu0 %v300
    %320 = vmatprep.subr.mxu0 0.0
    %321 = vmatpush1.msra.mxu0 %v299
    %322 = vmatprep.subr.mxu0 0.0
    %323 = vmatpush1.msra.mxu0 %v298
    %324 = vmatprep.subr.mxu0 0.0
    %325 = vmatpush1.msra.mxu0 %v297
    %326 = vmatprep.subr.mxu0 0.0
    %327 = vmatpush1.msra.mxu0 %v296
    %328 = vmatprep.subr.mxu0 0.0
    %329 = vmatpush1.msra.mxu0 %v295
    %330 = vmatprep.subr.mxu0 0.0
    %331 = vmatpush1.msra.mxu0 %v294
    %332 = vmatprep.subr.mxu0 0.0
    %333 = vmatpush1.msra.mxu0 %v293
    %334 = vmatprep.subr.mxu0 0.0
    %335 = vmatpush1.msra.mxu0 %v292
    %336 = vmatprep.subr.mxu0 0.0
    %337 = vmatpush1.msra.mxu0 %v291
    %338 = vmatprep.subr.mxu0 0.0
    %339 = vmatpush1.msra.mxu0 %v290
    %340 = vmatprep.subr.mxu0 0.0
    %341 = vmatpush1.msra.mxu0 %v289
    %342 = vmatprep.subr.mxu0 0.0
    %343 = vmatpush2.msra.mxu0 0.0
    %344 = vmatprep.subr.mxu0 0.0
    %345 = vmatpush2.msra.mxu0 0.0
    %346 = vmatprep.subr.mxu0 0.0
    %347 = vmatpush2.msra.mxu0 0.0
    %348 = vmatprep.subr.mxu0 0.0
    %349 = vmatpush2.msra.mxu0 0.0
    %350 = vmatprep.subr.mxu0 0.0
    %351 = vmatpush2.msra.mxu0 0.0
    %352 = vmatprep.subr.mxu0 0.0
    %353 = vmatpush2.msra.mxu0 0.0
    %354 = vmatprep.subr.mxu0 0.0
    %355 = vmatpush2.msra.mxu0 0.0
    %356 = vmatprep.subr.mxu0 0.0
    %357 = vmatpush2.msra.mxu0 0.0
    %358 = vmatprep.subr.mxu0 0.0
    %359 = vmatpush2.msra.mxu0 0.0
    %360 = vmatprep.subr.mxu0 0.0
    %361 = vmatpush2.msra.mxu0 0.0
    %362 = vmatprep.subr.mxu0 0.0
    %363 = vmatpush2.msra.mxu0 0.0
    %364 = vmatprep.subr.mxu0 0.0
    %365 = vmatpush2.msra.mxu0 0.0
    %366 = vmatprep.subr.mxu0 0.0
    %367 = vmatpush2.msra.mxu0 0.0
    %368 = vmatprep.subr.mxu0 0.0
    %369 = vmatpush2.msra.mxu0 0.0
    %370 = vmatprep.subr.mxu0 0.0
    %371 = vmatpush2.msra.mxu0 0.0
    %372 = vmatprep.subr.mxu0 0.0
    %373 = vmatpush2.msra.mxu0 0.0
    %374 = vmatprep.mubr.f32.mxu0 0.0
    %375 = vmatmul.mubr.f32.gmra.mxu0 %v287
    %v376 = vpop.f32.mrf.mxu0
    %v377 = vadd.f32 %v309, %v376
    %v378 = vpop.f32.mrf.mxu0
    %379 = vmatprep.mubr.f32.mxu0 0.0
    %380 = vmatmul.mubr.f32.gmra.mxu0 %v288
    %v381 = vpop.f32.mrf.mxu0
    %v382 = vadd.f32 %v309, %v381
    %v383 = vpop.f32.mrf.mxu0
    %384 = vdwg.mxu0
    %v385 = vmax.f32 %v377, 0.0
    %v386 = vmax.f32 %v382, 0.0
    %v387 = vld [vmem:[#allocation8] sm:$0xff]
    %v388 = vld [vmem:[#allocation8 + $0x8] sm:$0xff]
    %v389 = vld [vmem:[#allocation8 + $0x10] sm:$0xff]
    %v390 = vld [vmem:[#allocation8 + $0x18] sm:$0xff]
    %v391 = vld [vmem:[#allocation8 + $0x20] sm:$0xff]
    %v392 = vld [vmem:[#allocation8 + $0x28] sm:$0xff]
    %v393 = vld [vmem:[#allocation8 + $0x30] sm:$0xff]
    %v394 = vld [vmem:[#allocation8 + $0x38] sm:$0xff]
    %v395 = vld [vmem:[#allocation8 + $0x40] sm:$0xff]
    %v396 = vld [vmem:[#allocation8 + $0x48] sm:$0xff]
    %v397 = vld [vmem:[#allocation8 + $0x50] sm:$0xff]
    %v398 = vld [vmem:[#allocation8 + $0x58] sm:$0xff]
    %v399 = vld [vmem:[#allocation8 + $0x60] sm:$0xff]
    %v400 = vld [vmem:[#allocation8 + $0x68] sm:$0xff]
    %v401 = vld [vmem:[#allocation8 + $0x70] sm:$0xff]
    %v402 = vld [vmem:[#allocation8 + $0x78] sm:$0xff]
    %v403 = vld [vmem:[%s7 + $0x4] sm:$0x1]
    %v404 = vlaneseq
    %v405 = vshrl.u32 %v404, 7
    %v406 = vsub.s32 0, %v405
    %v407 = vrot.slane %v403, %v406
    %408 = vmatprep.subr.mxu0 0.0
    %409 = vmatpush1.msra.mxu0 %v402
    %410 = vmatprep.subr.mxu0 0.0
    %411 = vmatpush1.msra.mxu0 %v401
    %412 = vmatprep.subr.mxu0 0.0
    %413 = vmatpush1.msra.mxu0 %v400
    %414 = vmatprep.subr.mxu0 0.0
    %415 = vmatpush1.msra.mxu0 %v399
    %416 = vmatprep.subr.mxu0 0.0
    %417 = vmatpush1.msra.mxu0 %v398
    %418 = vmatprep.subr.mxu0 0.0
    %419 = vmatpush1.msra.mxu0 %v397
    %420 = vmatprep.subr.mxu0 0.0
    %421 = vmatpush1.msra.mxu0 %v396
    %422 = vmatprep.subr.mxu0 0.0
    %423 = vmatpush1.msra.mxu0 %v395
    %424 = vmatprep.subr.mxu0 0.0
    %425 = vmatpush1.msra.mxu0 %v394
    %426 = vmatprep.subr.mxu0 0.0
    %427 = vmatpush1.msra.mxu0 %v393
    %428 = vmatprep.subr.mxu0 0.0
    %429 = vmatpush1.msra.mxu0 %v392
    %430 = vmatprep.subr.mxu0 0.0
    %431 = vmatpush1.msra.mxu0 %v391
    %432 = vmatprep.subr.mxu0 0.0
    %433 = vmatpush1.msra.mxu0 %v390
    %434 = vmatprep.subr.mxu0 0.0
    %435 = vmatpush1.msra.mxu0 %v389
    %436 = vmatprep.subr.mxu0 0.0
    %437 = vmatpush1.msra.mxu0 %v388
    %438 = vmatprep.subr.mxu0 0.0
    %439 = vmatpush1.msra.mxu0 %v387
    %440 = vmatprep.subr.mxu0 0.0
    %441 = vmatpush2.msra.mxu0 0.0
    %442 = vmatprep.subr.mxu0 0.0
    %443 = vmatpush2.msra.mxu0 0.0
    %444 = vmatprep.subr.mxu0 0.0
    %445 = vmatpush2.msra.mxu0 0.0
    %446 = vmatprep.subr.mxu0 0.0
    %447 = vmatpush2.msra.mxu0 0.0
    %448 = vmatprep.subr.mxu0 0.0
    %449 = vmatpush2.msra.mxu0 0.0
    %450 = vmatprep.subr.mxu0 0.0
    %451 = vmatpush2.msra.mxu0 0.0
    %452 = vmatprep.subr.mxu0 0.0
    %453 = vmatpush2.msra.mxu0 0.0
    %454 = vmatprep.subr.mxu0 0.0
    %455 = vmatpush2.msra.mxu0 0.0
    %456 = vmatprep.subr.mxu0 0.0
    %457 = vmatpush2.msra.mxu0 0.0
    %458 = vmatprep.subr.mxu0 0.0
    %459 = vmatpush2.msra.mxu0 0.0
    %460 = vmatprep.subr.mxu0 0.0
    %461 = vmatpush2.msra.mxu0 0.0
    %462 = vmatprep.subr.mxu0 0.0
    %463 = vmatpush2.msra.mxu0 0.0
    %464 = vmatprep.subr.mxu0 0.0
    %465 = vmatpush2.msra.mxu0 0.0
    %466 = vmatprep.subr.mxu0 0.0
    %467 = vmatpush2.msra.mxu0 0.0
    %468 = vmatprep.subr.mxu0 0.0
    %469 = vmatpush2.msra.mxu0 0.0
    %470 = vmatprep.subr.mxu0 0.0
    %471 = vmatpush2.msra.mxu0 0.0
    %472 = vmatprep.mubr.f32.mxu0 0.0
    %473 = vmatmul.mubr.f32.gmra.mxu0 %v385
    %v474 = vpop.f32.mrf.mxu0
    %v475 = vadd.f32 %v407, %v474
    %v476 = vpop.f32.mrf.mxu0
    %477 = vmatprep.mubr.f32.mxu0 0.0
    %478 = vmatmul.mubr.f32.gmra.mxu0 %v386
    %v479 = vpop.f32.mrf.mxu0
    %v480 = vadd.f32 %v407, %v479
    %v481 = vpop.f32.mrf.mxu0
    %482 = vdwg.mxu0
    %v483 = vld [vmem:[#allocation10] sm:$0xff]
    %v484 = vld [vmem:[#allocation10 + $0x8] sm:$0xff]
    %v485 = vld [vmem:[#allocation10 + $0x10] sm:$0xff]
    %v486 = vld [vmem:[#allocation10 + $0x18] sm:$0xff]
    %v487 = vld [vmem:[#allocation10 + $0x20] sm:$0xff]
    %v488 = vld [vmem:[#allocation10 + $0x28] sm:$0xff]
    %v489 = vld [vmem:[#allocation10 + $0x30] sm:$0xff]
    %v490 = vld [vmem:[#allocation10 + $0x38] sm:$0xff]
    %v491 = vld [vmem:[#allocation10 + $0x40] sm:$0xff]
    %v492 = vld [vmem:[#allocation10 + $0x48] sm:$0xff]
    %v493 = vld [vmem:[#allocation10 + $0x50] sm:$0xff]
    %v494 = vld [vmem:[#allocation10 + $0x58] sm:$0xff]
    %v495 = vld [vmem:[#allocation10 + $0x60] sm:$0xff]
    %v496 = vld [vmem:[#allocation10 + $0x68] sm:$0xff]
    %v497 = vld [vmem:[#allocation10 + $0x70] sm:$0xff]
    %v498 = vld [vmem:[#allocation10 + $0x78] sm:$0xff]
    %v499 = vld [vmem:[%s7 + $0x5] sm:$0x1]
    %v500 = vlaneseq
    %v501 = vshrl.u32 %v500, 7
    %v502 = vsub.s32 0, %v501
    %v503 = vrot.slane %v499, %v502
    %504 = vmatprep.subr.mxu0 0.0
    %505 = vmatpush1.msra.mxu0 %v498
    %506 = vmatprep.subr.mxu0 0.0
    %507 = vmatpush1.msra.mxu0 %v497
    %508 = vmatprep.subr.mxu0 0.0
    %509 = vmatpush1.msra.mxu0 %v496
    %510 = vmatprep.subr.mxu0 0.0
    %511 = vmatpush1.msra.mxu0 %v495
    %512 = vmatprep.subr.mxu0 0.0
    %513 = vmatpush1.msra.mxu0 %v494
    %514 = vmatprep.subr.mxu0 0.0
    %515 = vmatpush1.msra.mxu0 %v493
    %516 = vmatprep.subr.mxu0 0.0
    %517 = vmatpush1.msra.mxu0 %v492
    %518 = vmatprep.subr.mxu0 0.0
    %519 = vmatpush1.msra.mxu0 %v491
    %520 = vmatprep.subr.mxu0 0.0
    %521 = vmatpush1.msra.mxu0 %v490
    %522 = vmatprep.subr.mxu0 0.0
    %523 = vmatpush1.msra.mxu0 %v489
    %524 = vmatprep.subr.mxu0 0.0
    %525 = vmatpush1.msra.mxu0 %v488
    %526 = vmatprep.subr.mxu0 0.0
    %527 = vmatpush1.msra.mxu0 %v487
    %528 = vmatprep.subr.mxu0 0.0
    %529 = vmatpush1.msra.mxu0 %v486
    %530 = vmatprep.subr.mxu0 0.0
    %531 = vmatpush1.msra.mxu0 %v485
    %532 = vmatprep.subr.mxu0 0.0
    %533 = vmatpush1.msra.mxu0 %v484
    %534 = vmatprep.subr.mxu0 0.0
    %535 = vmatpush1.msra.mxu0 %v483
    %536 = vmatprep.subr.mxu0 0.0
    %537 = vmatpush2.msra.mxu0 0.0
    %538 = vmatprep.subr.mxu0 0.0
    %539 = vmatpush2.msra.mxu0 0.0
    %540 = vmatprep.subr.mxu0 0.0
    %541 = vmatpush2.msra.mxu0 0.0
    %542 = vmatprep.subr.mxu0 0.0
    %543 = vmatpush2.msra.mxu0 0.0
    %544 = vmatprep.subr.mxu0 0.0
    %545 = vmatpush2.msra.mxu0 0.0
    %546 = vmatprep.subr.mxu0 0.0
    %547 = vmatpush2.msra.mxu0 0.0
    %548 = vmatprep.subr.mxu0 0.0
    %549 = vmatpush2.msra.mxu0 0.0
    %550 = vmatprep.subr.mxu0 0.0
    %551 = vmatpush2.msra.mxu0 0.0
    %552 = vmatprep.subr.mxu0 0.0
    %553 = vmatpush2.msra.mxu0 0.0
    %554 = vmatprep.subr.mxu0 0.0
    %555 = vmatpush2.msra.mxu0 0.0
    %556 = vmatprep.subr.mxu0 0.0
    %557 = vmatpush2.msra.mxu0 0.0
    %558 = vmatprep.subr.mxu0 0.0
    %559 = vmatpush2.msra.mxu0 0.0
    %560 = vmatprep.subr.mxu0 0.0
    %561 = vmatpush2.msra.mxu0 0.0
    %562 = vmatprep.subr.mxu0 0.0
    %563 = vmatpush2.msra.mxu0 0.0
    %564 = vmatprep.subr.mxu0 0.0
    %565 = vmatpush2.msra.mxu0 0.0
    %566 = vmatprep.subr.mxu0 0.0
    %567 = vmatpush2.msra.mxu0 0.0
    %568 = vmatprep.mubr.f32.mxu0 0.0
    %569 = vmatmul.mubr.f32.gmra.mxu0 %v475
    %v570 = vpop.f32.mrf.mxu0
    %v571 = vadd.f32 %v503, %v570
    %v572 = vpop.f32.mrf.mxu0
    %573 = vmatprep.mubr.f32.mxu0 0.0
    %574 = vmatmul.mubr.f32.gmra.mxu0 %v480
    %v575 = vpop.f32.mrf.mxu0
    %v576 = vadd.f32 %v503, %v575
    %v577 = vpop.f32.mrf.mxu0
    %578 = vdwg.mxu0
    %v579 = vmax.f32 %v571, 0.0
    %v580 = vmax.f32 %v576, 0.0
    %v581 = vld [vmem:[#allocation11] sm:$0xff]
    %v582 = vld [vmem:[#allocation11 + $0x8] sm:$0xff]
    %v583 = vld [vmem:[#allocation11 + $0x10] sm:$0xff]
    %v584 = vld [vmem:[#allocation11 + $0x18] sm:$0xff]
    %v585 = vld [vmem:[#allocation11 + $0x20] sm:$0xff]
    %v586 = vld [vmem:[#allocation11 + $0x28] sm:$0xff]
    %v587 = vld [vmem:[#allocation11 + $0x30] sm:$0xff]
    %v588 = vld [vmem:[#allocation11 + $0x38] sm:$0xff]
    %v589 = vld [vmem:[#allocation11 + $0x40] sm:$0xff]
    %v590 = vld [vmem:[#allocation11 + $0x48] sm:$0xff]
    %v591 = vld [vmem:[#allocation11 + $0x50] sm:$0xff]
    %v592 = vld [vmem:[#allocation11 + $0x58] sm:$0xff]
    %v593 = vld [vmem:[#allocation11 + $0x60] sm:$0xff]
    %v594 = vld [vmem:[#allocation11 + $0x68] sm:$0xff]
    %v595 = vld [vmem:[#allocation11 + $0x70] sm:$0xff]
    %v596 = vld [vmem:[#allocation11 + $0x78] sm:$0xff]
    %v597 = vld [vmem:[%s7 + $0x6] sm:$0x1]
    %v598 = vlaneseq
    %v599 = vshrl.u32 %v598, 7
    %v600 = vsub.s32 0, %v599
    %v601 = vrot.slane %v597, %v600
    %602 = vmatprep.subr.mxu0 0.0
    %603 = vmatpush1.msra.mxu0 %v596
    %604 = vmatprep.subr.mxu0 0.0
    %605 = vmatpush1.msra.mxu0 %v595
    %606 = vmatprep.subr.mxu0 0.0
    %607 = vmatpush1.msra.mxu0 %v594
    %608 = vmatprep.subr.mxu0 0.0
    %609 = vmatpush1.msra.mxu0 %v593
    %610 = vmatprep.subr.mxu0 0.0
    %611 = vmatpush1.msra.mxu0 %v592
    %612 = vmatprep.subr.mxu0 0.0
    %613 = vmatpush1.msra.mxu0 %v591
    %614 = vmatprep.subr.mxu0 0.0
    %615 = vmatpush1.msra.mxu0 %v590
    %616 = vmatprep.subr.mxu0 0.0
    %617 = vmatpush1.msra.mxu0 %v589
    %618 = vmatprep.subr.mxu0 0.0
    %619 = vmatpush1.msra.mxu0 %v588
    %620 = vmatprep.subr.mxu0 0.0
    %621 = vmatpush1.msra.mxu0 %v587
    %622 = vmatprep.subr.mxu0 0.0
    %623 = vmatpush1.msra.mxu0 %v586
    %624 = vmatprep.subr.mxu0 0.0
    %625 = vmatpush1.msra.mxu0 %v585
    %626 = vmatprep.subr.mxu0 0.0
    %627 = vmatpush1.msra.mxu0 %v584
    %628 = vmatprep.subr.mxu0 0.0
    %629 = vmatpush1.msra.mxu0 %v583
    %630 = vmatprep.subr.mxu0 0.0
    %631 = vmatpush1.msra.mxu0 %v582
    %632 = vmatprep.subr.mxu0 0.0
    %633 = vmatpush1.msra.mxu0 %v581
    %634 = vmatprep.subr.mxu0 0.0
    %635 = vmatpush2.msra.mxu0 0.0
    %636 = vmatprep.subr.mxu0 0.0
    %637 = vmatpush2.msra.mxu0 0.0
    %638 = vmatprep.subr.mxu0 0.0
    %639 = vmatpush2.msra.mxu0 0.0
    %640 = vmatprep.subr.mxu0 0.0
    %641 = vmatpush2.msra.mxu0 0.0
    %642 = vmatprep.subr.mxu0 0.0
    %643 = vmatpush2.msra.mxu0 0.0
    %644 = vmatprep.subr.mxu0 0.0
    %645 = vmatpush2.msra.mxu0 0.0
    %646 = vmatprep.subr.mxu0 0.0
    %647 = vmatpush2.msra.mxu0 0.0
    %648 = vmatprep.subr.mxu0 0.0
    %649 = vmatpush2.msra.mxu0 0.0
    %650 = vmatprep.subr.mxu0 0.0
    %651 = vmatpush2.msra.mxu0 0.0
    %652 = vmatprep.subr.mxu0 0.0
    %653 = vmatpush2.msra.mxu0 0.0
    %654 = vmatprep.subr.mxu0 0.0
    %655 = vmatpush2.msra.mxu0 0.0
    %656 = vmatprep.subr.mxu0 0.0
    %657 = vmatpush2.msra.mxu0 0.0
    %658 = vmatprep.subr.mxu0 0.0
    %659 = vmatpush2.msra.mxu0 0.0
    %660 = vmatprep.subr.mxu0 0.0
    %661 = vmatpush2.msra.mxu0 0.0
    %662 = vmatprep.subr.mxu0 0.0
    %663 = vmatpush2.msra.mxu0 0.0
    %664 = vmatprep.subr.mxu0 0.0
    %665 = vmatpush2.msra.mxu0 0.0
    %666 = vmatprep.mubr.f32.mxu0 0.0
    %667 = vmatmul.mubr.f32.gmra.mxu0 %v579
    %v668 = vpop.f32.mrf.mxu0
    %v669 = vadd.f32 %v601, %v668
    %v670 = vpop.f32.mrf.mxu0
    %671 = vmatprep.mubr.f32.mxu0 0.0
    %672 = vmatmul.mubr.f32.gmra.mxu0 %v580
    %v673 = vpop.f32.mrf.mxu0
    %v674 = vadd.f32 %v601, %v673
    %v675 = vpop.f32.mrf.mxu0
    %676 = vdwg.mxu0
    %v677 = vmax.f32 %v669, 0.0
    %v678 = vmax.f32 %v674, 0.0
    %v679 = vld [vmem:[#allocation13] sm:$0xff]
    %v680 = vld [vmem:[#allocation13 + $0x8] sm:$0xff]
    %v681 = vld [vmem:[#allocation13 + $0x10] sm:$0xff]
    %v682 = vld [vmem:[#allocation13 + $0x18] sm:$0xff]
    %v683 = vld [vmem:[#allocation13 + $0x20] sm:$0xff]
    %v684 = vld [vmem:[#allocation13 + $0x28] sm:$0xff]
    %v685 = vld [vmem:[#allocation13 + $0x30] sm:$0xff]
    %v686 = vld [vmem:[#allocation13 + $0x38] sm:$0xff]
    %v687 = vld [vmem:[#allocation13 + $0x40] sm:$0xff]
    %v688 = vld [vmem:[#allocation13 + $0x48] sm:$0xff]
    %v689 = vld [vmem:[#allocation13 + $0x50] sm:$0xff]
    %v690 = vld [vmem:[#allocation13 + $0x58] sm:$0xff]
    %v691 = vld [vmem:[#allocation13 + $0x60] sm:$0xff]
    %v692 = vld [vmem:[#allocation13 + $0x68] sm:$0xff]
    %v693 = vld [vmem:[#allocation13 + $0x70] sm:$0xff]
    %v694 = vld [vmem:[#allocation13 + $0x78] sm:$0xff]
    %v695 = vld [vmem:[%s7 + $0x7] sm:$0x1]
    %v696 = vlaneseq
    %v697 = vshrl.u32 %v696, 7
    %v698 = vsub.s32 0, %v697
    %v699 = vrot.slane %v695, %v698
    %700 = vmatprep.subr.mxu0 0.0
    %701 = vmatpush1.msra.mxu0 %v694
    %702 = vmatprep.subr.mxu0 0.0
    %703 = vmatpush1.msra.mxu0 %v693
    %704 = vmatprep.subr.mxu0 0.0
    %705 = vmatpush1.msra.mxu0 %v692
    %706 = vmatprep.subr.mxu0 0.0
    %707 = vmatpush1.msra.mxu0 %v691
    %708 = vmatprep.subr.mxu0 0.0
    %709 = vmatpush1.msra.mxu0 %v690
    %710 = vmatprep.subr.mxu0 0.0
    %711 = vmatpush1.msra.mxu0 %v689
    %712 = vmatprep.subr.mxu0 0.0
    %713 = vmatpush1.msra.mxu0 %v688
    %714 = vmatprep.subr.mxu0 0.0
    %715 = vmatpush1.msra.mxu0 %v687
    %716 = vmatprep.subr.mxu0 0.0
    %717 = vmatpush1.msra.mxu0 %v686
    %718 = vmatprep.subr.mxu0 0.0
    %719 = vmatpush1.msra.mxu0 %v685
    %720 = vmatprep.subr.mxu0 0.0
    %721 = vmatpush1.msra.mxu0 %v684
    %722 = vmatprep.subr.mxu0 0.0
    %723 = vmatpush1.msra.mxu0 %v683
    %724 = vmatprep.subr.mxu0 0.0
    %725 = vmatpush1.msra.mxu0 %v682
    %726 = vmatprep.subr.mxu0 0.0
    %727 = vmatpush1.msra.mxu0 %v681
    %728 = vmatprep.subr.mxu0 0.0
    %729 = vmatpush1.msra.mxu0 %v680
    %730 = vmatprep.subr.mxu0 0.0
    %731 = vmatpush1.msra.mxu0 %v679
    %732 = vmatprep.subr.mxu0 0.0
    %733 = vmatpush2.msra.mxu0 0.0
    %734 = vmatprep.subr.mxu0 0.0
    %735 = vmatpush2.msra.mxu0 0.0
    %736 = vmatprep.subr.mxu0 0.0
    %737 = vmatpush2.msra.mxu0 0.0
    %738 = vmatprep.subr.mxu0 0.0
    %739 = vmatpush2.msra.mxu0 0.0
    %740 = vmatprep.subr.mxu0 0.0
    %741 = vmatpush2.msra.mxu0 0.0
    %742 = vmatprep.subr.mxu0 0.0
    %743 = vmatpush2.msra.mxu0 0.0
    %744 = vmatprep.subr.mxu0 0.0
    %745 = vmatpush2.msra.mxu0 0.0
    %746 = vmatprep.subr.mxu0 0.0
    %747 = vmatpush2.msra.mxu0 0.0
    %748 = vmatprep.subr.mxu0 0.0
    %749 = vmatpush2.msra.mxu0 0.0
    %750 = vmatprep.subr.mxu0 0.0
    %751 = vmatpush2.msra.mxu0 0.0
    %752 = vmatprep.subr.mxu0 0.0
    %753 = vmatpush2.msra.mxu0 0.0
    %754 = vmatprep.subr.mxu0 0.0
    %755 = vmatpush2.msra.mxu0 0.0
    %756 = vmatprep.subr.mxu0 0.0
    %757 = vmatpush2.msra.mxu0 0.0
    %758 = vmatprep.subr.mxu0 0.0
    %759 = vmatpush2.msra.mxu0 0.0
    %760 = vmatprep.subr.mxu0 0.0
    %761 = vmatpush2.msra.mxu0 0.0
    %762 = vmatprep.subr.mxu0 0.0
    %763 = vmatpush2.msra.mxu0 0.0
    %764 = vmatprep.mubr.f32.mxu0 0.0
    %765 = vmatmul.mubr.f32.gmra.mxu0 %v677
    %v766 = vpop.f32.mrf.mxu0
    %v767 = vadd.f32 %v699, %v766
    %v768 = vpop.f32.mrf.mxu0
    %769 = vmatprep.mubr.f32.mxu0 0.0
    %770 = vmatmul.mubr.f32.gmra.mxu0 %v678
    %v771 = vpop.f32.mrf.mxu0
    %v772 = vadd.f32 %v699, %v771
    %v773 = vpop.f32.mrf.mxu0
    %774 = vdwg.mxu0
    %v775 = vtanh.pop %v767
    %v776 = vtanh.pop %v772
    %777 = vst [vmem:[#allocation14] sm:$0xff] %v775
    %778 = vst [vmem:[#allocation14 + $0x8] sm:$0xff] %v776
    // Predicated region
    $region62: #{tpu_custom_call.1} parent=1 // pred_check
      _
    $region63: #{tpu_custom_call.1} parent=1 // pred_check_branch
      %780 = sbr.rel (0) target = $region65
    $region64: #{tpu_custom_call.1} parent=1 // pred_region
      %s782 = ssub.s32 256, 256
      %783 = vsyncadd [#allocation4], %s782
      %s784 = sshll.u32 [#allocation14], 4
      %s785 = int_to_ptr.vmem [resolvable:$true] %s784
      %790 = dma.vmem_to_hbm [thread:$0]  %s785, 256, %s8, [#allocation4], 128, 128, 8
    $region65: #{tpu_custom_call.1} parent=1 // pred_fallthru
      _
    // Predicated region
    $region66: #{tpu_custom_call.1} parent=1 // pred_check
      _
    $region67: #{tpu_custom_call.1} parent=1 // pred_check_branch
      %792 = sbr.rel (0) target = $region69
    $region68: #{tpu_custom_call.1} parent=1 // pred_region
      %793 = dma.done [#allocation4], 256
    $region69: #{tpu_custom_call.1} parent=1 // pred_fallthru
      _
    %794 = vsyncpa [#allocation3], 1
    %795 = vsyncpa [#allocation6], 1
    %796 = vsyncpa [#allocation9], 1
    %797 = vsyncpa [#allocation12], 1
    %798 = vsyncpa [#allocation4], 1

</llo_original>
